<compile_context>
chip_gen: v6e
topology: v6e:2x2x1
jax: 0.10.0
libtpu: 0.0.40
codegen_flags: <defaults>
</compile_context>

<pallas_src>
import numpy as np
import jax
import jax.numpy as jnp
from jax.experimental import pallas as pl
from jax.experimental.pallas import tpu as pltpu

# ----------------------------- hyperparameters ------------------------------
RATE = 32000
N_FFT = 256
HOP = 64
MEL_BINS = 64
FREQ = N_FFT // 2 + 1          # 129
FREQ_PAD = 256                 # lane-aligned frequency axis (zero padded)
MEL_PAD = 128                  # lane-dense output width (zero padded)
FMIN, FMAX = 20.0, 14000.0
AMIN = 1e-10
REF = 1.0                      # ref=1.0 -> no subtraction; top_db=None -> no clamp


# ----------------------- deterministic parameter setup ----------------------
def _hann_periodic(n):
    # scipy.signal.get_window('hann', n, fftbins=True)
    return 0.5 - 0.5 * np.cos(2.0 * np.pi * np.arange(n) / n)


def _dft_kernels(n_fft):
    # torchlibrosa STFT conv kernels: W[n,k] = exp(-2j*pi*n*k/N), windowed.
    n = np.arange(n_fft)
    k = np.arange(FREQ)
    ang = -2.0 * np.pi * np.outer(n, k) / n_fft
    win = _hann_periodic(n_fft)[:, None]
    w_real = (np.cos(ang) * win).astype(np.float32)   # (n_fft, FREQ)
    w_imag = (np.sin(ang) * win).astype(np.float32)   # (n_fft, FREQ)
    return w_real, w_imag


def _hz_to_mel(f):
    # Slaney mel scale (librosa default, htk=False)
    f = np.asarray(f, dtype=np.float64)
    f_sp = 200.0 / 3
    mels = f / f_sp
    min_log_hz = 1000.0
    min_log_mel = min_log_hz / f_sp
    logstep = np.log(6.4) / 27.0
    return np.where(f >= min_log_hz,
                    min_log_mel + np.log(np.maximum(f, 1e-20) / min_log_hz) / logstep,
                    mels)


def _mel_to_hz(m):
    m = np.asarray(m, dtype=np.float64)
    f_sp = 200.0 / 3
    freqs = f_sp * m
    min_log_hz = 1000.0
    min_log_mel = min_log_hz / f_sp
    logstep = np.log(6.4) / 27.0
    return np.where(m >= min_log_mel,
                    min_log_hz * np.exp(logstep * (m - min_log_mel)),
                    freqs)


def _mel_filterbank(sr, n_fft, n_mels, fmin, fmax):
    # librosa.filters.mel(sr, n_fft, n_mels, fmin, fmax), norm='slaney', htk=False
    fftfreqs = np.linspace(0.0, sr / 2.0, 1 + n_fft // 2)
    mel_pts = np.linspace(_hz_to_mel(fmin), _hz_to_mel(fmax), n_mels + 2)
    mel_f = _mel_to_hz(mel_pts)
    fdiff = np.diff(mel_f)
    ramps = mel_f[:, None] - fftfreqs[None, :]
    weights = np.zeros((n_mels, len(fftfreqs)), dtype=np.float64)
    for i in range(n_mels):
        lower = -ramps[i] / fdiff[i]
        upper = ramps[i + 2] / fdiff[i + 1]
        weights[i] = np.maximum(0.0, np.minimum(lower, upper))
    enorm = 2.0 / (mel_f[2:n_mels + 2] - mel_f[:n_mels])
    weights *= enorm[:, None]
    return weights.T.astype(np.float32)   # (FREQ, n_mels) — torchlibrosa stores melW = mel(...).T


W_REAL_NP, W_IMAG_NP = _dft_kernels(N_FFT)                 # (256, 129) each
MEL_W_NP = _mel_filterbank(RATE, N_FFT, MEL_BINS, FMIN, FMAX)  # (129, 64)

# Combined, lane-padded DFT weight: one matmul produces [re | im] (zero pads -> exact).
W_DFT_NP = np.zeros((N_FFT, 2 * FREQ_PAD), dtype=np.float32)
W_DFT_NP[:, :FREQ] = W_REAL_NP
W_DFT_NP[:, FREQ_PAD:FREQ_PAD + FREQ] = W_IMAG_NP

# Lane-padded mel weight: (FREQ_PAD, MEL_PAD); extra rows/cols are zero.
MEL_W_PAD_NP = np.zeros((FREQ_PAD, MEL_PAD), dtype=np.float32)
MEL_W_PAD_NP[:FREQ, :MEL_BINS] = MEL_W_NP


# -------------------------------- Pallas kernel ------------------------------
def _logmel_kernel(frames_ref, wdft_ref, mel_ref, out_ref):
    # Fused STFT (re+im in one MXU pass) -> power -> mel -> 10*log10 per row tile.
    f = frames_ref[...]                                                 # (TM, N_FFT)
    spec = jnp.dot(f, wdft_ref[...],
                   preferred_element_type=jnp.float32)                  # (TM, 2*FREQ_PAD)
    re = spec[:, :FREQ_PAD]
    im = spec[:, FREQ_PAD:]
    power = re * re + im * im                                           # f32, padded cols exactly 0
    mel = jnp.dot(power.astype(mel_ref.dtype), mel_ref[...],
                  preferred_element_type=jnp.float32)                   # (TM, MEL_PAD)
    # power_to_db: 10*log10(max(S, amin)) - 10*log10(max(amin, ref)); ref=1, top_db=None
    out_ref[...] = 10.0 * jnp.log10(jnp.maximum(mel, AMIN))


def _pick_tile_rows(n, max_tm=512):
    """Large row tile for MXU efficiency; >=2 grid steps when possible (v7x has 2 TCs)."""
    if n <= 16:
        return 16
    half = -(-n // 2)                 # cdiv(n, 2)
    tm = -(-half // 16) * 16          # round up to 16 (bf16 sublane packing)
    return min(max_tm, tm)


def feature_extractor(wav, *, use_bf16=True, max_tile_rows=512):
    """Mirrors Feature_Extractor.forward (Spectrogram + LogmelFilterBank + .squeeze())."""
    if wav.ndim == 3:
        wav = wav.mean(-1)                         # average channels
    wav = wav.astype(jnp.float32)
    B, L = wav.shape

    # center=True, reflect padding by n_fft//2 on both sides
    pad = N_FFT // 2
    x = jnp.pad(wav, ((0, 0), (pad, pad)), mode="reflect")
    Lp = L + 2 * pad
    T = (Lp - N_FFT) // HOP + 1

    # frame into overlapping windows: (B, T, n_fft) -> (B*T, n_fft)
    idx = jnp.arange(T)[:, None] * HOP + jnp.arange(N_FFT)[None, :]
    frames = x[:, idx].reshape(B * T, N_FFT)

    N = B * T
    TM = _pick_tile_rows(N, max_tile_rows)
    Npad = ((N + TM - 1) // TM) * TM

    mm_dtype = jnp.bfloat16 if use_bf16 else jnp.float32
    frames_p = jnp.pad(frames, ((0, Npad - N), (0, 0))).astype(mm_dtype)
    wdft = jnp.asarray(W_DFT_NP).astype(mm_dtype)
    mel_w = jnp.asarray(MEL_W_PAD_NP).astype(mm_dtype)

    itemsize = 2 if use_bf16 else 4
    cost = pl.CostEstimate(
        flops=2 * Npad * (N_FFT * 2 * FREQ_PAD + FREQ_PAD * MEL_PAD),
        transcendentals=Npad * MEL_PAD,
        bytes_accessed=(Npad * N_FFT + N_FFT * 2 * FREQ_PAD + FREQ_PAD * MEL_PAD) * itemsize
                       + Npad * MEL_PAD * 4,
    )

    out = pl.pallas_call(
        _logmel_kernel,
        out_shape=jax.ShapeDtypeStruct((Npad, MEL_PAD), jnp.float32),
        grid=(Npad // TM,),
        in_specs=[
            pl.BlockSpec((TM, N_FFT), lambda i: (i, 0)),              # frames tile
            pl.BlockSpec((N_FFT, 2 * FREQ_PAD), lambda i: (0, 0)),    # [wr | wi] resident
            pl.BlockSpec((FREQ_PAD, MEL_PAD), lambda i: (0, 0)),      # mel weight resident
        ],
        out_specs=pl.BlockSpec((TM, MEL_PAD), lambda i: (i, 0)),
        compiler_params=pltpu.CompilerParams(dimension_semantics=("parallel",)),
        cost_estimate=cost,
    )(frames_p, wdft, mel_w)

    M = out[:N, :MEL_BINS].reshape(B, 1, T, MEL_BINS)
    # PyTorch: M has shape (B, 1, T, mel) -> .squeeze() removes ALL size-1 dims
    return jnp.squeeze(M)


# ------------------------- pure-JAX reference (f32) --------------------------
def _reference_logmel(wav):
    if wav.ndim == 3:
        wav = wav.mean(-1)
    wav = wav.astype(jnp.float32)
    B, L = wav.shape
    pad = N_FFT // 2
    x = jnp.pad(wav, ((0, 0), (pad, pad)), mode="reflect")
    T = (L + 2 * pad - N_FFT) // HOP + 1
    idx = jnp.arange(T)[:, None] * HOP + jnp.arange(N_FFT)[None, :]
    frames = x[:, idx]                                             # (B, T, n_fft)
    re = jnp.einsum("btn,nf->btf", frames, jnp.asarray(W_REAL_NP))
    im = jnp.einsum("btn,nf->btf", frames, jnp.asarray(W_IMAG_NP))
    power = re * re + im * im
    mel = jnp.einsum("btf,fm->btm", power, jnp.asarray(MEL_W_NP))
    out = 10.0 * jnp.log10(jnp.maximum(mel, AMIN))
    return jnp.squeeze(out.reshape(B, 1, T, MEL_BINS))


if __name__ == "__main__":
    key = jax.random.PRNGKey(0)
    # small input: batch=2, 1024 samples, 2 channels (exercises the mean(-1) branch)
    wav = jax.random.normal(key, (2, 1024, 2), dtype=jnp.float32)

    T_expect = 1024 // HOP + 1

    out_bf16 = jax.block_until_ready(feature_extractor(wav, use_bf16=True))
    out_f32 = jax.block_until_ready(feature_extractor(wav, use_bf16=False))
    ref = jax.block_until_ready(_reference_logmel(wav))

    assert out_bf16.shape == (2, T_expect, MEL_BINS), out_bf16.shape
    assert out_f32.shape == ref.shape == out_bf16.shape
    assert bool(jnp.all(jnp.isfinite(out_bf16)))
    assert bool(jnp.all(jnp.isfinite(out_f32)))
    # f32 kernel path must match the pure-JAX reference closely (dB scale).
    err = float(jnp.max(jnp.abs(out_f32 - ref)))
    assert err < 0.25, f"f32 kernel vs reference max |diff| = {err}"
    print("KERNEL_OK")
</pallas_src>

<mosaic_0001>
module attributes {stable_mosaic.version = 11 : i64} {
  func.func @_logmel_kernel(%arg0: i32, %arg1: memref<32x256xbf16, #tpu.memory_space<vmem>>, %arg2: memref<256x512xbf16, #tpu.memory_space<vmem>>, %arg3: memref<256x128xbf16, #tpu.memory_space<vmem>>, %arg4: memref<32x128xf32, #tpu.memory_space<vmem>>) attributes {dimension_semantics = [#tpu.dimension_semantics<parallel>], iteration_bounds = array<i64: 2>, scalar_prefetch = 0 : i64, scratch_operands = 0 : i64, tpu.core_type = #tpu.core_type<tc>, window_params = [{transform_indices = @transform_0, window_bounds = array<i64: 32, 256>}, {pipeline_mode = #tpu.pipeline_mode<synchronous>, transform_indices = @transform_1, window_bounds = array<i64: 256, 512>}, {pipeline_mode = #tpu.pipeline_mode<synchronous>, transform_indices = @transform_2, window_bounds = array<i64: 256, 128>}, {transform_indices = @transform_3, window_bounds = array<i64: 32, 128>}]} {
    %c0 = arith.constant 0 : index
    %c0_0 = arith.constant 0 : index
    %0 = vector.load %arg1[%c0, %c0_0] : memref<32x256xbf16, #tpu.memory_space<vmem>>, vector<32x256xbf16>
    %c0_1 = arith.constant 0 : index
    %c0_2 = arith.constant 0 : index
    %1 = vector.load %arg2[%c0_1, %c0_2] : memref<256x512xbf16, #tpu.memory_space<vmem>>, vector<256x512xbf16>
    %cst = arith.constant dense<0.000000e+00> : vector<32x512xf32>
    %2 = tpu.matmul %0, %1, %cst {dimension_numbers = #tpu.dot_dimension_numbers<[1], [0], [0], [1], [0, 0, 1, 1], [], []>} : vector<32x256xbf16>, vector<256x512xbf16>, vector<32x512xf32> -> vector<32x512xf32>
    %3 = vector.extract_strided_slice %2 {offsets = [0, 0], sizes = [32, 256], strides = [1, 1]} : vector<32x512xf32> to vector<32x256xf32>
    %4 = vector.extract_strided_slice %2 {offsets = [0, 256], sizes = [32, 256], strides = [1, 1]} : vector<32x512xf32> to vector<32x256xf32>
    %5 = arith.mulf %3, %3 : vector<32x256xf32>
    %6 = arith.mulf %4, %4 : vector<32x256xf32>
    %7 = arith.addf %5, %6 : vector<32x256xf32>
    %8 = arith.truncf %7 : vector<32x256xf32> to vector<32x256xbf16>
    %c0_3 = arith.constant 0 : index
    %c0_4 = arith.constant 0 : index
    %9 = vector.load %arg3[%c0_3, %c0_4] : memref<256x128xbf16, #tpu.memory_space<vmem>>, vector<256x128xbf16>
    %cst_5 = arith.constant dense<0.000000e+00> : vector<32x128xf32>
    %10 = tpu.matmul %8, %9, %cst_5 {dimension_numbers = #tpu.dot_dimension_numbers<[1], [0], [0], [1], [0, 0, 1, 1], [], []>} : vector<32x256xbf16>, vector<256x128xbf16>, vector<32x128xf32> -> vector<32x128xf32>
    %cst_6 = arith.constant 1.000000e-10 : f32
    %11 = vector.broadcast %cst_6 : f32 to vector<32x128xf32>
    %12 = arith.maximumf %10, %11 : vector<32x128xf32>
    %13 = math.log %12 : vector<32x128xf32>
    %cst_7 = arith.constant 0.434294492 : f32
    %14 = vector.broadcast %cst_7 : f32 to vector<32x128xf32>
    %15 = arith.mulf %13, %14 : vector<32x128xf32>
    %cst_8 = arith.constant 1.000000e+01 : f32
    %16 = vector.broadcast %cst_8 : f32 to vector<32x128xf32>
    %17 = arith.mulf %16, %15 : vector<32x128xf32>
    %c0_9 = arith.constant 0 : index
    %c0_10 = arith.constant 0 : index
    %18 = vector.load %arg4[%c0_9, %c0_10] : memref<32x128xf32, #tpu.memory_space<vmem>>, vector<32x128xf32>
    tpu.vector_store %arg4[%c0_9, %c0_10], %17 {strides = array<i32>} : memref<32x128xf32, #tpu.memory_space<vmem>>, vector<32x128xf32>,
    return
  }
  func.func @transform_0(%arg0: i32) -> (i32, i32) {
    %c0_i32 = arith.constant 0 : i32
    %c0_i32_0 = arith.constant 0 : i32
    return %arg0, %c0_i32 : i32, i32
  }
  func.func @transform_1(%arg0: i32) -> (i32, i32) {
    %c0_i32 = arith.constant 0 : i32
    %c0_i32_0 = arith.constant 0 : i32
    %c0_i32_1 = arith.constant 0 : i32
    return %c0_i32, %c0_i32_0 : i32, i32
  }
  func.func @transform_2(%arg0: i32) -> (i32, i32) {
    %c0_i32 = arith.constant 0 : i32
    %c0_i32_0 = arith.constant 0 : i32
    %c0_i32_1 = arith.constant 0 : i32
    return %c0_i32, %c0_i32_0 : i32, i32
  }
  func.func @transform_3(%arg0: i32) -> (i32, i32) {
    %c0_i32 = arith.constant 0 : i32
    %c0_i32_0 = arith.constant 0 : i32
    return %arg0, %c0_i32 : i32, i32
  }
}

</mosaic_0001>

<llo_original>
// kernel: tpu_custom_call.1
$region0: #{tpu_custom_call.1}
  #allocation0 [shape = 'u32[]', space=smem, size = 0x4, offset = 0x4, fixed_abs, tag = 'smem constant byte address 0x4 - core index']
  #allocation1 [shape = 'u32[144,128]{1,0:T(1,128)}', space=vmem, size = 0x12000, scoped, tag = 'internal scratch']
  %s0 = inlined_call_operand.hbm [shape: bf16[64,256], index: 0, kind: input, shape index: {}]
  %s1 = inlined_call_operand.hbm [shape: bf16[256,512], index: 1, kind: input, shape index: {}]
  %s2 = inlined_call_operand.hbm [shape: bf16[256,128], index: 2, kind: input, shape index: {}]
  %s3 = inlined_call_operand.hbm [shape: f32[64,128], index: 3, kind: output, shape index: {}]
  %s4 = sld [smem:[#allocation0]]
  $region57: #{tpu_custom_call.1} parent=0
    _
  %s6 = ssub.s32 1, %s4
  %s7 = scalar_select 0, %s6, %s4
  $region1: #{tpu_custom_call.1} parent=0
    #allocation2 [shape = 'u8[32768]{0}', space=vmem, size = 0x8000, scoped, tag = 'input window, operand 0']
    #allocation3 [shape = 's32[2]{0}', space=sflag, size = 0x8, scoped, tag = 'scoped memory for tpu_custom_call.1']
    #allocation4 [shape = 's32[2]{0}', space=sflag, size = 0x8, scoped, tag = 'scoped memory for tpu_custom_call.1']
    #allocation5 [shape = 'u8[262144]{0}', space=vmem, size = 0x40000, scoped, tag = 'input window, operand 1, single buffered']
    #allocation6 [shape = 's32[1]{0}', space=sflag, size = 0x4, scoped, tag = 'scoped memory for tpu_custom_call.1']
    #allocation7 [shape = 'u8[65536]{0}', space=vmem, size = 0x10000, scoped, tag = 'input window, operand 2, single buffered']
    #allocation8 [shape = 'u8[32768]{0}', space=vmem, size = 0x8000, scoped, tag = 'output window, operand 0']
    %8 = vsyncpa [#allocation3], 0
    %s9 = scalar_lea.sflag [#allocation3], 1
    %10 = vsyncpa %s9, 0
    %11 = vsyncpa [#allocation6], 0
    %12 = vsyncpa [#allocation4], 0
    %s13 = scalar_lea.sflag [#allocation4], 1
    %14 = vsyncpa %s13, 0
    loop: start=0, step=1, limit=4
    $region2: #{tpu_custom_call.1} parent=1 // loop_pre_header
      _
    $region3: #{tpu_custom_call.1} parent=1 // loop_header
      %s16 = sphi 0, %s20
      %p17 = scmp.ge.s32.totalorder %s16, 4
      %s26 = sphi 0, %s28
      %s29 = sphi 0, %s26
      %s30 = sphi 0, %s29
      %s46 = sphi 0, %s30
      %s50 = sphi 0, %s50
      %s52 = sphi 0, %s50
      %s53 = sphi 0, %s52
      %s67 = sphi 0, %s53
      %s71 = sphi 0, %s71
      %s73 = sphi 0, %s71
      %s74 = sphi 0, %s73
      %s88 = sphi 0, %s74
      %s94 = sphi 0, %s96
      %s97 = sphi 0, %s94
      %s98 = sphi 0, %s97
      %s114 = sphi 0, %s98
    $region4: #{tpu_custom_call.1} parent=1 // loop_header_branch
      %19 = sbr.rel (%p17) target = $region8
    $region5: #{tpu_custom_call.1} parent=1 // loop_body
      %s21 = ssub.s32 %s16, 1
      %s22 = ssub.s32 %s16, 2
      %s23 = sadd.s32 %s16, 1
      %s24 = ssub.s32 %s16, %s23
      %p25 = scmp.eq.s32.totalorder %s24, 0
      %s27 = sadd.s32 %s26, 1
      %s28 = scalar_select %p25, %s26, %s27
      %p31 = pneg %p25
      %p32 = scmp.eq.s32.totalorder %s16, 1
      %p33 = por %p31, %p32
      %p34 = scmp.ne.s32.totalorder %s26, %s29
      %p35 = scmp.eq.s32.totalorder %s16, 0
      %p36 = por %p34, %p35
      %p37 = scmp.ne.s32.totalorder %s26, %s29
      %p38 = scmp.eq.s32.totalorder %s21, 1
      %p39 = por %p37, %p38
      %p40 = scmp.ne.s32.totalorder %s29, %s30
      %p41 = scmp.eq.s32.totalorder %s21, 0
      %p42 = por %p40, %p41
      %p43 = scmp.ne.s32.totalorder %s29, %s30
      %p44 = scmp.eq.s32.totalorder %s22, 1
      %p45 = por %p43, %p44
      %p47 = scmp.ne.s32.totalorder %s30, %s46
      %p48 = scmp.eq.s32.totalorder %s22, 0
      %p49 = por %p47, %p48
      %s51 = sadd.s32 %s50, 1
      %p54 = scmp.eq.s32.totalorder %s16, 1
      %p55 = scmp.ne.s32.totalorder %s50, %s52
      %p56 = scmp.eq.s32.totalorder %s16, 0
      %p57 = por %p55, %p56
      %p58 = scmp.ne.s32.totalorder %s50, %s52
      %p59 = scmp.eq.s32.totalorder %s21, 1
      %p60 = por %p58, %p59
      %p61 = scmp.ne.s32.totalorder %s52, %s53
      %p62 = scmp.eq.s32.totalorder %s21, 0
      %p63 = por %p61, %p62
      %p64 = scmp.ne.s32.totalorder %s52, %s53
      %p65 = scmp.eq.s32.totalorder %s22, 1
      %p66 = por %p64, %p65
      %p68 = scmp.ne.s32.totalorder %s53, %s67
      %p69 = scmp.eq.s32.totalorder %s22, 0
      %p70 = por %p68, %p69
      %s72 = sadd.s32 %s71, 1
      %p75 = scmp.eq.s32.totalorder %s16, 1
      %p76 = scmp.ne.s32.totalorder %s71, %s73
      %p77 = scmp.eq.s32.totalorder %s16, 0
      %p78 = por %p76, %p77
      %p79 = scmp.ne.s32.totalorder %s71, %s73
      %p80 = scmp.eq.s32.totalorder %s21, 1
      %p81 = por %p79, %p80
      %p82 = scmp.ne.s32.totalorder %s73, %s74
      %p83 = scmp.eq.s32.totalorder %s21, 0
      %p84 = por %p82, %p83
      %p85 = scmp.ne.s32.totalorder %s73, %s74
      %p86 = scmp.eq.s32.totalorder %s22, 1
      %p87 = por %p85, %p86
      %p89 = scmp.ne.s32.totalorder %s74, %s88
      %p90 = scmp.eq.s32.totalorder %s22, 0
      %p91 = por %p89, %p90
      %s92 = ssub.s32 %s16, %s23
      %p93 = scmp.eq.s32.totalorder %s92, 0
      %s95 = sadd.s32 %s94, 1
      %s96 = scalar_select %p93, %s94, %s95
      %p99 = pneg %p93
      %p100 = scmp.eq.s32.totalorder %s16, 1
      %p101 = por %p99, %p100
      %p102 = scmp.ne.s32.totalorder %s94, %s97
      %p103 = scmp.eq.s32.totalorder %s16, 0
      %p104 = por %p102, %p103
      %p105 = scmp.ne.s32.totalorder %s94, %s97
      %p106 = scmp.eq.s32.totalorder %s21, 1
      %p107 = por %p105, %p106
      %p108 = scmp.ne.s32.totalorder %s97, %s98
      %p109 = scmp.eq.s32.totalorder %s21, 0
      %p110 = por %p108, %p109
      %p111 = scmp.ne.s32.totalorder %s97, %s98
      %p112 = scmp.eq.s32.totalorder %s22, 1
      %p113 = por %p111, %p112
      %p115 = scmp.ne.s32.totalorder %s98, %s114
      %p116 = scmp.eq.s32.totalorder %s22, 0
      %p117 = por %p115, %p116
      %p118 = scmp.le.s32.totalorder 1, %s16
      %p119 = scmp.lt.s32.totalorder %s16, 3
      %p120 = pnand %p118, %p119
      %p121 = pneg %p120
      // Predicated region
      $region9: #{tpu_custom_call.1} parent=5 // pred_check
        _
      $region10: #{tpu_custom_call.1} parent=5 // pred_check_branch
        %123 = sbr.rel (%p120) target = $region12
      $region11: #{tpu_custom_call.1} parent=5 // pred_region
        %s124 = ssub.s32 %s16, 1
        // Predicated region
        $region13: #{tpu_custom_call.1} parent=11 // pred_check
          %p125 = pneg %p63
        $region14: #{tpu_custom_call.1} parent=11 // pred_check_branch
          %127 = sbr.rel (%p125) target = $region16
        $region15: #{tpu_custom_call.1} parent=11 // pred_region
          %s129 = ssub.s32 8192, 8192
          %130 = vsyncadd [#allocation6], %s129
          %s131 = sshll.u32 [#allocation5], 4
          %s132 = int_to_ptr.vmem [resolvable:$true] %s131
          %137 = dma.hbm_to_vmem [thread:$0]  %s1, 8192, %s132, [#allocation6], 256, 256, 16
        $region16: #{tpu_custom_call.1} parent=11 // pred_fallthru
          _
        // Predicated region
        $region17: #{tpu_custom_call.1} parent=11 // pred_check
          %p138 = pneg %p84
        $region18: #{tpu_custom_call.1} parent=11 // pred_check_branch
          %140 = sbr.rel (%p138) target = $region20
        $region19: #{tpu_custom_call.1} parent=11 // pred_region
          %s142 = ssub.s32 2048, 2048
          %143 = vsyncadd [#allocation6], %s142
          %s144 = sshll.u32 [#allocation7], 4
          %s145 = int_to_ptr.vmem [resolvable:$true] %s144
          %150 = dma.hbm_to_vmem [thread:$0]  %s2, 2048, %s145, [#allocation6], 64, 64, 4
        $region20: #{tpu_custom_call.1} parent=11 // pred_fallthru
          _
      $region12: #{tpu_custom_call.1} parent=5 // pred_fallthru
        _
      %p151 = scmp.lt.s32.totalorder %s16, 2
      // Predicated region
      $region21: #{tpu_custom_call.1} parent=5 // pred_check
        %p152 = pneg %p151
      $region22: #{tpu_custom_call.1} parent=5 // pred_check_branch
        %154 = sbr.rel (%p152) target = $region24
      $region23: #{tpu_custom_call.1} parent=5 // pred_region
        // Predicated region
        $region25: #{tpu_custom_call.1} parent=23 // pred_check
          %p155 = pneg %p36
        $region26: #{tpu_custom_call.1} parent=23 // pred_check_branch
          %157 = sbr.rel (%p155) target = $region28
        $region27: #{tpu_custom_call.1} parent=23 // pred_region
          %s158 = sand.u32 %s26, 1
          %s159 = scalar_lea.sflag [#allocation3], %s158
          %s160 = sand.u32 %s26, 1
          %s161 = smul.addr %s160, 32
          %s162 = scalar_lea.vmem [#allocation2], %s161
          %s163 = smul.u32 4, %s16
          %s165 = ssub.s32 512, 512
          %166 = vsyncadd %s159, %s165
          %s167 = smul.addr %s163, 2
          %s168 = smul.addr %s167, 64
          %s169 = scalar_lea.hbm %s0, %s168
          %s170 = sshll.u32 %s162, 4
          %s171 = int_to_ptr.vmem [resolvable:$true] %s170
          %176 = dma.hbm_to_vmem [thread:$0]  %s169, 512, %s171, %s159, 128, 128, 8
        $region28: #{tpu_custom_call.1} parent=23 // pred_fallthru
          _
      $region24: #{tpu_custom_call.1} parent=5 // pred_fallthru
        _
      %p177 = scmp.le.s32.totalorder 1, %s16
      %p178 = scmp.lt.s32.totalorder %s16, 3
      %p179 = pnand %p177, %p178
      %p180 = pneg %p179
      // Predicated region
      $region29: #{tpu_custom_call.1} parent=5 // pred_check
        _
      $region30: #{tpu_custom_call.1} parent=5 // pred_check_branch
        %182 = sbr.rel (%p179) target = $region32
      $region31: #{tpu_custom_call.1} parent=5 // pred_region
        %s183 = ssub.s32 %s16, 1
        %s184 = sand.u32 %s29, 1
        %s185 = scalar_lea.sflag [#allocation3], %s184
        %s186 = sand.u32 %s29, 1
        %s187 = smul.addr %s186, 32
        %s188 = scalar_lea.vmem [#allocation2], %s187
        // Predicated region
        $region33: #{tpu_custom_call.1} parent=31 // pred_check
          %p189 = pneg %p42
        $region34: #{tpu_custom_call.1} parent=31 // pred_check_branch
          %191 = sbr.rel (%p189) target = $region36
        $region35: #{tpu_custom_call.1} parent=31 // pred_region
          %192 = dma.done %s185, 512
        $region36: #{tpu_custom_call.1} parent=31 // pred_fallthru
          _
        // Predicated region
        $region37: #{tpu_custom_call.1} parent=31 // pred_check
          %p193 = pneg %p63
        $region38: #{tpu_custom_call.1} parent=31 // pred_check_branch
          %195 = sbr.rel (%p193) target = $region40
        $region39: #{tpu_custom_call.1} parent=31 // pred_region
          %196 = dma.done [#allocation6], 8192
        $region40: #{tpu_custom_call.1} parent=31 // pred_fallthru
          _
        // Predicated region
        $region41: #{tpu_custom_call.1} parent=31 // pred_check
          %p197 = pneg %p84
        $region42: #{tpu_custom_call.1} parent=31 // pred_check_branch
          %199 = sbr.rel (%p197) target = $region44
        $region43: #{tpu_custom_call.1} parent=31 // pred_region
          %200 = dma.done [#allocation6], 2048
        $region44: #{tpu_custom_call.1} parent=31 // pred_fallthru
          _
        %s201 = sand.u32 %s29, 1
        %s202 = scalar_lea.sflag [#allocation3], %s201
        %s203 = sand.u32 %s29, 1
        %s204 = smul.addr %s203, 32
        %s205 = scalar_lea.vmem [#allocation2], %s204
        %p206 = pneg %p42
        %p207 = pneg %p39
        %p208 = pneg %p63
        %p209 = pneg %p60
        %p210 = pneg %p84
        %p211 = pneg %p81
        %p212 = pneg %p110
        %p213 = pneg %p107
        %s214 = sand.u32 %s97, 1
        %s215 = scalar_lea.sflag [#allocation4], %s214
        %s216 = sand.u32 %s97, 1
        %s217 = smul.addr %s216, 32
        %s218 = scalar_lea.vmem [#allocation8], %s217
        %s219 = smul.u32 4, %s21
        %s220 = smul.u32 4, %s21
        %v222 = vld [vmem:[%s188] sm:$0xff]
        %v223 = vld [vmem:[%s188 + $0x8] sm:$0xff]
        %v224 = vld [vmem:[%s188 + $0x10] sm:$0xff]
        %v225 = vld [vmem:[%s188 + $0x18] sm:$0xff]
        %v226 = vld [vmem:[#allocation5] sm:$0xff]
        %v227 = vld [vmem:[#allocation5 + $0x8] sm:$0xff]
        %v228 = vld [vmem:[#allocation5 + $0x10] sm:$0xff]
        %v229 = vld [vmem:[#allocation5 + $0x18] sm:$0xff]
        %v230 = vld [vmem:[#allocation5 + $0x20] sm:$0xff]
        %v231 = vld [vmem:[#allocation5 + $0x28] sm:$0xff]
        %v232 = vld [vmem:[#allocation5 + $0x30] sm:$0xff]
        %v233 = vld [vmem:[#allocation5 + $0x38] sm:$0xff]
        %v234 = vld [vmem:[#allocation5 + $0x40] sm:$0xff]
        %v235 = vld [vmem:[#allocation5 + $0x48] sm:$0xff]
        %v236 = vld [vmem:[#allocation5 + $0x50] sm:$0xff]
        %v237 = vld [vmem:[#allocation5 + $0x58] sm:$0xff]
        %v238 = vld [vmem:[#allocation5 + $0x60] sm:$0xff]
        %v239 = vld [vmem:[#allocation5 + $0x68] sm:$0xff]
        %v240 = vld [vmem:[#allocation5 + $0x70] sm:$0xff]
        %v241 = vld [vmem:[#allocation5 + $0x78] sm:$0xff]
        %v242 = vld [vmem:[#allocation5 + $0x80] sm:$0xff]
        %v243 = vld [vmem:[#allocation5 + $0x88] sm:$0xff]
        %v244 = vld [vmem:[#allocation5 + $0x90] sm:$0xff]
        %v245 = vld [vmem:[#allocation5 + $0x98] sm:$0xff]
        %v246 = vld [vmem:[#allocation5 + $0xa0] sm:$0xff]
        %v247 = vld [vmem:[#allocation5 + $0xa8] sm:$0xff]
        %v248 = vld [vmem:[#allocation5 + $0xb0] sm:$0xff]
        %v249 = vld [vmem:[#allocation5 + $0xb8] sm:$0xff]
        %v250 = vld [vmem:[#allocation5 + $0xc0] sm:$0xff]
        %v251 = vld [vmem:[#allocation5 + $0xc8] sm:$0xff]
        %v252 = vld [vmem:[#allocation5 + $0xd0] sm:$0xff]
        %v253 = vld [vmem:[#allocation5 + $0xd8] sm:$0xff]
        %v254 = vld [vmem:[#allocation5 + $0xe0] sm:$0xff]
        %v255 = vld [vmem:[#allocation5 + $0xe8] sm:$0xff]
        %v256 = vld [vmem:[#allocation5 + $0xf0] sm:$0xff]
        %v257 = vld [vmem:[#allocation5 + $0xf8] sm:$0xff]
        %v258 = vld [vmem:[#allocation5 + $0x100] sm:$0xff]
        %v259 = vld [vmem:[#allocation5 + $0x108] sm:$0xff]
        %v260 = vld [vmem:[#allocation5 + $0x110] sm:$0xff]
        %v261 = vld [vmem:[#allocation5 + $0x118] sm:$0xff]
        %v262 = vld [vmem:[#allocation5 + $0x120] sm:$0xff]
        %v263 = vld [vmem:[#allocation5 + $0x128] sm:$0xff]
        %v264 = vld [vmem:[#allocation5 + $0x130] sm:$0xff]
        %v265 = vld [vmem:[#allocation5 + $0x138] sm:$0xff]
        %v266 = vld [vmem:[#allocation5 + $0x140] sm:$0xff]
        %v267 = vld [vmem:[#allocation5 + $0x148] sm:$0xff]
        %v268 = vld [vmem:[#allocation5 + $0x150] sm:$0xff]
        %v269 = vld [vmem:[#allocation5 + $0x158] sm:$0xff]
        %v270 = vld [vmem:[#allocation5 + $0x160] sm:$0xff]
        %v271 = vld [vmem:[#allocation5 + $0x168] sm:$0xff]
        %v272 = vld [vmem:[#allocation5 + $0x170] sm:$0xff]
        %v273 = vld [vmem:[#allocation5 + $0x178] sm:$0xff]
        %v274 = vld [vmem:[#allocation5 + $0x180] sm:$0xff]
        %v275 = vld [vmem:[#allocation5 + $0x188] sm:$0xff]
        %v276 = vld [vmem:[#allocation5 + $0x190] sm:$0xff]
        %v277 = vld [vmem:[#allocation5 + $0x198] sm:$0xff]
        %v278 = vld [vmem:[#allocation5 + $0x1a0] sm:$0xff]
        %v279 = vld [vmem:[#allocation5 + $0x1a8] sm:$0xff]
        %v280 = vld [vmem:[#allocation5 + $0x1b0] sm:$0xff]
        %v281 = vld [vmem:[#allocation5 + $0x1b8] sm:$0xff]
        %v282 = vld [vmem:[#allocation5 + $0x1c0] sm:$0xff]
        %v283 = vld [vmem:[#allocation5 + $0x1c8] sm:$0xff]
        %v284 = vld [vmem:[#allocation5 + $0x1d0] sm:$0xff]
        %v285 = vld [vmem:[#allocation5 + $0x1d8] sm:$0xff]
        %v286 = vld [vmem:[#allocation5 + $0x1e0] sm:$0xff]
        %v287 = vld [vmem:[#allocation5 + $0x1e8] sm:$0xff]
        %v288 = vld [vmem:[#allocation5 + $0x1f0] sm:$0xff]
        %v289 = vld [vmem:[#allocation5 + $0x1f8] sm:$0xff]
        %v294 = vunpack.c.l.b16 %v222
        %v295 = vunpack.c.h.b16 %v222
        %v296 = vunpack.c.l.b16 %v223
        %v297 = vunpack.c.h.b16 %v223
        %v298 = vunpack.c.l.b16 %v224
        %v299 = vunpack.c.h.b16 %v224
        %v300 = vunpack.c.l.b16 %v225
        %v301 = vunpack.c.h.b16 %v225
        %v302 = vpack.c.b16 %v296, %v294
        %v303 = vpack.c.b16 %v297, %v295
        %v304 = vpack.c.b16 %v300, %v298
        %v305 = vpack.c.b16 %v301, %v299
        %v374 = vunpack.c.l.b16 %v226
        %v375 = vunpack.c.h.b16 %v226
        %v376 = vunpack.c.l.b16 %v227
        %v377 = vunpack.c.h.b16 %v227
        %v378 = vunpack.c.l.b16 %v228
        %v379 = vunpack.c.h.b16 %v228
        %v380 = vunpack.c.l.b16 %v229
        %v381 = vunpack.c.h.b16 %v229
        %v382 = vunpack.c.l.b16 %v230
        %v383 = vunpack.c.h.b16 %v230
        %v384 = vunpack.c.l.b16 %v231
        %v385 = vunpack.c.h.b16 %v231
        %v386 = vunpack.c.l.b16 %v232
        %v387 = vunpack.c.h.b16 %v232
        %v388 = vunpack.c.l.b16 %v233
        %v389 = vunpack.c.h.b16 %v233
        %v390 = vunpack.c.l.b16 %v234
        %v391 = vunpack.c.h.b16 %v234
        %v392 = vunpack.c.l.b16 %v235
        %v393 = vunpack.c.h.b16 %v235
        %v394 = vunpack.c.l.b16 %v236
        %v395 = vunpack.c.h.b16 %v236
        %v396 = vunpack.c.l.b16 %v237
        %v397 = vunpack.c.h.b16 %v237
        %v398 = vunpack.c.l.b16 %v238
        %v399 = vunpack.c.h.b16 %v238
        %v400 = vunpack.c.l.b16 %v239
        %v401 = vunpack.c.h.b16 %v239
        %v402 = vunpack.c.l.b16 %v240
        %v403 = vunpack.c.h.b16 %v240
        %v404 = vunpack.c.l.b16 %v241
        %v405 = vunpack.c.h.b16 %v241
        %v406 = vunpack.c.l.b16 %v242
        %v407 = vunpack.c.h.b16 %v242
        %v408 = vunpack.c.l.b16 %v243
        %v409 = vunpack.c.h.b16 %v243
        %v410 = vunpack.c.l.b16 %v244
        %v411 = vunpack.c.h.b16 %v244
        %v412 = vunpack.c.l.b16 %v245
        %v413 = vunpack.c.h.b16 %v245
        %v414 = vunpack.c.l.b16 %v246
        %v415 = vunpack.c.h.b16 %v246
        %v416 = vunpack.c.l.b16 %v247
        %v417 = vunpack.c.h.b16 %v247
        %v418 = vunpack.c.l.b16 %v248
        %v419 = vunpack.c.h.b16 %v248
        %v420 = vunpack.c.l.b16 %v249
        %v421 = vunpack.c.h.b16 %v249
        %v422 = vunpack.c.l.b16 %v250
        %v423 = vunpack.c.h.b16 %v250
        %v424 = vunpack.c.l.b16 %v251
        %v425 = vunpack.c.h.b16 %v251
        %v426 = vunpack.c.l.b16 %v252
        %v427 = vunpack.c.h.b16 %v252
        %v428 = vunpack.c.l.b16 %v253
        %v429 = vunpack.c.h.b16 %v253
        %v430 = vunpack.c.l.b16 %v254
        %v431 = vunpack.c.h.b16 %v254
        %v432 = vunpack.c.l.b16 %v255
        %v433 = vunpack.c.h.b16 %v255
        %v434 = vunpack.c.l.b16 %v256
        %v435 = vunpack.c.h.b16 %v256
        %v436 = vunpack.c.l.b16 %v257
        %v437 = vunpack.c.h.b16 %v257
        %v438 = vunpack.c.l.b16 %v258
        %v439 = vunpack.c.h.b16 %v258
        %v440 = vunpack.c.l.b16 %v259
        %v441 = vunpack.c.h.b16 %v259
        %v442 = vunpack.c.l.b16 %v260
        %v443 = vunpack.c.h.b16 %v260
        %v444 = vunpack.c.l.b16 %v261
        %v445 = vunpack.c.h.b16 %v261
        %v446 = vunpack.c.l.b16 %v262
        %v447 = vunpack.c.h.b16 %v262
        %v448 = vunpack.c.l.b16 %v263
        %v449 = vunpack.c.h.b16 %v263
        %v450 = vunpack.c.l.b16 %v264
        %v451 = vunpack.c.h.b16 %v264
        %v452 = vunpack.c.l.b16 %v265
        %v453 = vunpack.c.h.b16 %v265
        %v454 = vunpack.c.l.b16 %v266
        %v455 = vunpack.c.h.b16 %v266
        %v456 = vunpack.c.l.b16 %v267
        %v457 = vunpack.c.h.b16 %v267
        %v458 = vunpack.c.l.b16 %v268
        %v459 = vunpack.c.h.b16 %v268
        %v460 = vunpack.c.l.b16 %v269
        %v461 = vunpack.c.h.b16 %v269
        %v462 = vunpack.c.l.b16 %v270
        %v463 = vunpack.c.h.b16 %v270
        %v464 = vunpack.c.l.b16 %v271
        %v465 = vunpack.c.h.b16 %v271
        %v466 = vunpack.c.l.b16 %v272
        %v467 = vunpack.c.h.b16 %v272
        %v468 = vunpack.c.l.b16 %v273
        %v469 = vunpack.c.h.b16 %v273
        %v470 = vunpack.c.l.b16 %v274
        %v471 = vunpack.c.h.b16 %v274
        %v472 = vunpack.c.l.b16 %v275
        %v473 = vunpack.c.h.b16 %v275
        %v474 = vunpack.c.l.b16 %v276
        %v475 = vunpack.c.h.b16 %v276
        %v476 = vunpack.c.l.b16 %v277
        %v477 = vunpack.c.h.b16 %v277
        %v478 = vunpack.c.l.b16 %v278
        %v479 = vunpack.c.h.b16 %v278
        %v480 = vunpack.c.l.b16 %v279
        %v481 = vunpack.c.h.b16 %v279
        %v482 = vunpack.c.l.b16 %v280
        %v483 = vunpack.c.h.b16 %v280
        %v484 = vunpack.c.l.b16 %v281
        %v485 = vunpack.c.h.b16 %v281
        %v486 = vunpack.c.l.b16 %v282
        %v487 = vunpack.c.h.b16 %v282
        %v488 = vunpack.c.l.b16 %v283
        %v489 = vunpack.c.h.b16 %v283
        %v490 = vunpack.c.l.b16 %v284
        %v491 = vunpack.c.h.b16 %v284
        %v492 = vunpack.c.l.b16 %v285
        %v493 = vunpack.c.h.b16 %v285
        %v494 = vunpack.c.l.b16 %v286
        %v495 = vunpack.c.h.b16 %v286
        %v496 = vunpack.c.l.b16 %v287
        %v497 = vunpack.c.h.b16 %v287
        %v498 = vunpack.c.l.b16 %v288
        %v499 = vunpack.c.h.b16 %v288
        %v500 = vunpack.c.l.b16 %v289
        %v501 = vunpack.c.h.b16 %v289
        %v502 = vpack.c.b16 %v378, %v374
        %v503 = vpack.c.b16 %v379, %v375
        %v504 = vpack.c.b16 %v380, %v376
        %v505 = vpack.c.b16 %v381, %v377
        %v506 = vpack.c.b16 %v386, %v382
        %v507 = vpack.c.b16 %v387, %v383
        %v508 = vpack.c.b16 %v388, %v384
        %v509 = vpack.c.b16 %v389, %v385
        %v510 = vpack.c.b16 %v394, %v390
        %v511 = vpack.c.b16 %v395, %v391
        %v512 = vpack.c.b16 %v396, %v392
        %v513 = vpack.c.b16 %v397, %v393
        %v514 = vpack.c.b16 %v402, %v398
        %v515 = vpack.c.b16 %v403, %v399
        %v516 = vpack.c.b16 %v404, %v400
        %v517 = vpack.c.b16 %v405, %v401
        %v518 = vpack.c.b16 %v410, %v406
        %v519 = vpack.c.b16 %v411, %v407
        %v520 = vpack.c.b16 %v412, %v408
        %v521 = vpack.c.b16 %v413, %v409
        %v522 = vpack.c.b16 %v418, %v414
        %v523 = vpack.c.b16 %v419, %v415
        %v524 = vpack.c.b16 %v420, %v416
        %v525 = vpack.c.b16 %v421, %v417
        %v526 = vpack.c.b16 %v426, %v422
        %v527 = vpack.c.b16 %v427, %v423
        %v528 = vpack.c.b16 %v428, %v424
        %v529 = vpack.c.b16 %v429, %v425
        %v530 = vpack.c.b16 %v434, %v430
        %v531 = vpack.c.b16 %v435, %v431
        %v532 = vpack.c.b16 %v436, %v432
        %v533 = vpack.c.b16 %v437, %v433
        %v534 = vpack.c.b16 %v442, %v438
        %v535 = vpack.c.b16 %v443, %v439
        %v536 = vpack.c.b16 %v444, %v440
        %v537 = vpack.c.b16 %v445, %v441
        %v538 = vpack.c.b16 %v450, %v446
        %v539 = vpack.c.b16 %v451, %v447
        %v540 = vpack.c.b16 %v452, %v448
        %v541 = vpack.c.b16 %v453, %v449
        %v542 = vpack.c.b16 %v458, %v454
        %v543 = vpack.c.b16 %v459, %v455
        %v544 = vpack.c.b16 %v460, %v456
        %v545 = vpack.c.b16 %v461, %v457
        %v546 = vpack.c.b16 %v466, %v462
        %v547 = vpack.c.b16 %v467, %v463
        %v548 = vpack.c.b16 %v468, %v464
        %v549 = vpack.c.b16 %v469, %v465
        %v550 = vpack.c.b16 %v474, %v470
        %v551 = vpack.c.b16 %v475, %v471
        %v552 = vpack.c.b16 %v476, %v472
        %v553 = vpack.c.b16 %v477, %v473
        %v554 = vpack.c.b16 %v482, %v478
        %v555 = vpack.c.b16 %v483, %v479
        %v556 = vpack.c.b16 %v484, %v480
        %v557 = vpack.c.b16 %v485, %v481
        %v558 = vpack.c.b16 %v490, %v486
        %v559 = vpack.c.b16 %v491, %v487
        %v560 = vpack.c.b16 %v492, %v488
        %v561 = vpack.c.b16 %v493, %v489
        %v562 = vpack.c.b16 %v498, %v494
        %v563 = vpack.c.b16 %v499, %v495
        %v564 = vpack.c.b16 %v500, %v496
        %v565 = vpack.c.b16 %v501, %v497
        %630 = vmatprep.subr.bf16.mxu0 %v531
        %631 = vmatpush1.bf16.msra.mxu0 %v530
        %632 = vmatprep.subr.bf16.mxu0 %v527
        %633 = vmatpush1.bf16.msra.mxu0 %v526
        %634 = vmatprep.subr.bf16.mxu0 %v523
        %635 = vmatpush1.bf16.msra.mxu0 %v522
        %636 = vmatprep.subr.bf16.mxu0 %v519
        %637 = vmatpush1.bf16.msra.mxu0 %v518
        %638 = vmatprep.subr.bf16.mxu0 %v515
        %639 = vmatpush1.bf16.msra.mxu0 %v514
        %640 = vmatprep.subr.bf16.mxu0 %v511
        %641 = vmatpush1.bf16.msra.mxu0 %v510
        %642 = vmatprep.subr.bf16.mxu0 %v507
        %643 = vmatpush1.bf16.msra.mxu0 %v506
        %644 = vmatprep.subr.bf16.mxu0 %v503
        %645 = vmatpush1.bf16.msra.mxu0 %v502
        %646 = vmatprep.subr.bf16.mxu0 %v563
        %647 = vmatpush2.bf16.msra.mxu0 %v562
        %648 = vmatprep.subr.bf16.mxu0 %v559
        %649 = vmatpush2.bf16.msra.mxu0 %v558
        %650 = vmatprep.subr.bf16.mxu0 %v555
        %651 = vmatpush2.bf16.msra.mxu0 %v554
        %652 = vmatprep.subr.bf16.mxu0 %v551
        %653 = vmatpush2.bf16.msra.mxu0 %v550
        %654 = vmatprep.subr.bf16.mxu0 %v547
        %655 = vmatpush2.bf16.msra.mxu0 %v546
        %656 = vmatprep.subr.bf16.mxu0 %v543
        %657 = vmatpush2.bf16.msra.mxu0 %v542
        %658 = vmatprep.subr.bf16.mxu0 %v539
        %659 = vmatpush2.bf16.msra.mxu0 %v538
        %660 = vmatprep.subr.bf16.mxu0 %v535
        %661 = vmatpush2.bf16.msra.mxu0 %v534
        %662 = vmatprep.mubr.bf16.mxu0 %v303
        %663 = vmatmul.mubr.bf16.gmra.mxu0 %v302
        %v664 = vpop.f32.mrf.mxu0
        %v665 = vadd.f32 0.0, %v664
        %v666 = vpop.f32.mrf.mxu0
        %v667 = vadd.f32 0.0, %v666
        %v668 = vpop.f32.mrf.mxu0
        %v669 = vadd.f32 0.0, %v668
        %v670 = vpop.f32.mrf.mxu0
        %v671 = vadd.f32 0.0, %v670
        %672 = vmatprep.mubr.bf16.mxu0 %v305
        %673 = vmatmul.mubr.bf16.gmra.mxu0 %v304
        %v674 = vpop.f32.mrf.mxu0
        %v675 = vadd.f32 0.0, %v674
        %v676 = vpop.f32.mrf.mxu0
        %v677 = vadd.f32 0.0, %v676
        %v678 = vpop.f32.mrf.mxu0
        %v679 = vadd.f32 0.0, %v678
        %v680 = vpop.f32.mrf.mxu0
        %v681 = vadd.f32 0.0, %v680
        %682 = vdwg.mxu0
        %683 = vmatprep.subr.bf16.mxu0 %v533
        %684 = vmatpush1.bf16.msra.mxu0 %v532
        %685 = vmatprep.subr.bf16.mxu0 %v529
        %686 = vmatpush1.bf16.msra.mxu0 %v528
        %687 = vmatprep.subr.bf16.mxu0 %v525
        %688 = vmatpush1.bf16.msra.mxu0 %v524
        %689 = vmatprep.subr.bf16.mxu0 %v521
        %690 = vmatpush1.bf16.msra.mxu0 %v520
        %691 = vmatprep.subr.bf16.mxu0 %v517
        %692 = vmatpush1.bf16.msra.mxu0 %v516
        %693 = vmatprep.subr.bf16.mxu0 %v513
        %694 = vmatpush1.bf16.msra.mxu0 %v512
        %695 = vmatprep.subr.bf16.mxu0 %v509
        %696 = vmatpush1.bf16.msra.mxu0 %v508
        %697 = vmatprep.subr.bf16.mxu0 %v505
        %698 = vmatpush1.bf16.msra.mxu0 %v504
        %699 = vmatprep.subr.bf16.mxu0 %v565
        %700 = vmatpush2.bf16.msra.mxu0 %v564
        %701 = vmatprep.subr.bf16.mxu0 %v561
        %702 = vmatpush2.bf16.msra.mxu0 %v560
        %703 = vmatprep.subr.bf16.mxu0 %v557
        %704 = vmatpush2.bf16.msra.mxu0 %v556
        %705 = vmatprep.subr.bf16.mxu0 %v553
        %706 = vmatpush2.bf16.msra.mxu0 %v552
        %707 = vmatprep.subr.bf16.mxu0 %v549
        %708 = vmatpush2.bf16.msra.mxu0 %v548
        %709 = vmatprep.subr.bf16.mxu0 %v545
        %710 = vmatpush2.bf16.msra.mxu0 %v544
        %711 = vmatprep.subr.bf16.mxu0 %v541
        %712 = vmatpush2.bf16.msra.mxu0 %v540
        %713 = vmatprep.subr.bf16.mxu0 %v537
        %714 = vmatpush2.bf16.msra.mxu0 %v536
        %715 = vmatprep.mubr.bf16.mxu0 %v303
        %716 = vmatmul.mubr.bf16.gmra.mxu0 %v302
        %v717 = vpop.f32.mrf.mxu0
        %v718 = vadd.f32 0.0, %v717
        %v719 = vpop.f32.mrf.mxu0
        %v720 = vadd.f32 0.0, %v719
        %v721 = vpop.f32.mrf.mxu0
        %v722 = vadd.f32 0.0, %v721
        %v723 = vpop.f32.mrf.mxu0
        %v724 = vadd.f32 0.0, %v723
        %725 = vmatprep.mubr.bf16.mxu0 %v305
        %726 = vmatmul.mubr.bf16.gmra.mxu0 %v304
        %v727 = vpop.f32.mrf.mxu0
        %v728 = vadd.f32 0.0, %v727
        %v729 = vpop.f32.mrf.mxu0
        %v730 = vadd.f32 0.0, %v729
        %v731 = vpop.f32.mrf.mxu0
        %v732 = vadd.f32 0.0, %v731
        %v733 = vpop.f32.mrf.mxu0
        %v734 = vadd.f32 0.0, %v733
        %735 = vdwg.mxu0
        %v736 = vmul.f32 %v665, %v665
        %v737 = vmul.f32 %v667, %v667
        %v738 = vmul.f32 %v669, %v669
        %v739 = vmul.f32 %v671, %v671
        %v740 = vmul.f32 %v675, %v675
        %v741 = vmul.f32 %v677, %v677
        %v742 = vmul.f32 %v679, %v679
        %v743 = vmul.f32 %v681, %v681
        %v744 = vmul.f32 %v718, %v718
        %v745 = vmul.f32 %v720, %v720
        %v746 = vmul.f32 %v722, %v722
        %v747 = vmul.f32 %v724, %v724
        %v748 = vmul.f32 %v728, %v728
        %v749 = vmul.f32 %v730, %v730
        %v750 = vmul.f32 %v732, %v732
        %v751 = vmul.f32 %v734, %v734
        %v752 = vadd.f32 %v736, %v744
        %v753 = vadd.f32 %v737, %v745
        %v754 = vadd.f32 %v738, %v746
        %v755 = vadd.f32 %v739, %v747
        %v756 = vadd.f32 %v740, %v748
        %v757 = vadd.f32 %v741, %v749
        %v758 = vadd.f32 %v742, %v750
        %v759 = vadd.f32 %v743, %v751
        %v760 = vpack.c.bf16 %v754, %v752
        %v761 = vpack.c.bf16 %v755, %v753
        %v762 = vpack.c.bf16 %v758, %v756
        %v763 = vpack.c.bf16 %v759, %v757
        %v764 = vld [vmem:[#allocation7] sm:$0xf]
        %v765 = vld [vmem:[#allocation7 + $0x4] sm:$0xf]
        %v766 = vld [vmem:[#allocation7 + $0x8] sm:$0xf]
        %v767 = vld [vmem:[#allocation7 + $0xc] sm:$0xf]
        %v768 = vld [vmem:[#allocation7 + $0x10] sm:$0xf]
        %v769 = vld [vmem:[#allocation7 + $0x14] sm:$0xf]
        %v770 = vld [vmem:[#allocation7 + $0x18] sm:$0xf]
        %v771 = vld [vmem:[#allocation7 + $0x1c] sm:$0xf]
        %v772 = vld [vmem:[#allocation7 + $0x20] sm:$0xf]
        %v773 = vld [vmem:[#allocation7 + $0x24] sm:$0xf]
        %v774 = vld [vmem:[#allocation7 + $0x28] sm:$0xf]
        %v775 = vld [vmem:[#allocation7 + $0x2c] sm:$0xf]
        %v776 = vld [vmem:[#allocation7 + $0x30] sm:$0xf]
        %v777 = vld [vmem:[#allocation7 + $0x34] sm:$0xf]
        %v778 = vld [vmem:[#allocation7 + $0x38] sm:$0xf]
        %v779 = vld [vmem:[#allocation7 + $0x3c] sm:$0xf]
        %v780 = vld [vmem:[#allocation7 + $0x40] sm:$0xf]
        %v781 = vld [vmem:[#allocation7 + $0x44] sm:$0xf]
        %v782 = vld [vmem:[#allocation7 + $0x48] sm:$0xf]
        %v783 = vld [vmem:[#allocation7 + $0x4c] sm:$0xf]
        %v784 = vld [vmem:[#allocation7 + $0x50] sm:$0xf]
        %v785 = vld [vmem:[#allocation7 + $0x54] sm:$0xf]
        %v786 = vld [vmem:[#allocation7 + $0x58] sm:$0xf]
        %v787 = vld [vmem:[#allocation7 + $0x5c] sm:$0xf]
        %v788 = vld [vmem:[#allocation7 + $0x60] sm:$0xf]
        %v789 = vld [vmem:[#allocation7 + $0x64] sm:$0xf]
        %v790 = vld [vmem:[#allocation7 + $0x68] sm:$0xf]
        %v791 = vld [vmem:[#allocation7 + $0x6c] sm:$0xf]
        %v792 = vld [vmem:[#allocation7 + $0x70] sm:$0xf]
        %v793 = vld [vmem:[#allocation7 + $0x74] sm:$0xf]
        %v794 = vld [vmem:[#allocation7 + $0x78] sm:$0xf]
        %v795 = vld [vmem:[#allocation7 + $0x7c] sm:$0xf]
        %v828 = vunpack.c.l.b16 %v764
        %v829 = vunpack.c.l.b16 %v765
        %v830 = vunpack.c.l.b16 %v766
        %v831 = vunpack.c.l.b16 %v767
        %v832 = vunpack.c.l.b16 %v768
        %v833 = vunpack.c.l.b16 %v769
        %v834 = vunpack.c.l.b16 %v770
        %v835 = vunpack.c.l.b16 %v771
        %v836 = vunpack.c.l.b16 %v772
        %v837 = vunpack.c.l.b16 %v773
        %v838 = vunpack.c.l.b16 %v774
        %v839 = vunpack.c.l.b16 %v775
        %v840 = vunpack.c.l.b16 %v776
        %v841 = vunpack.c.l.b16 %v777
        %v842 = vunpack.c.l.b16 %v778
        %v843 = vunpack.c.l.b16 %v779
        %v844 = vunpack.c.l.b16 %v780
        %v845 = vunpack.c.l.b16 %v781
        %v846 = vunpack.c.l.b16 %v782
        %v847 = vunpack.c.l.b16 %v783
        %v848 = vunpack.c.l.b16 %v784
        %v849 = vunpack.c.l.b16 %v785
        %v850 = vunpack.c.l.b16 %v786
        %v851 = vunpack.c.l.b16 %v787
        %v852 = vunpack.c.l.b16 %v788
        %v853 = vunpack.c.l.b16 %v789
        %v854 = vunpack.c.l.b16 %v790
        %v855 = vunpack.c.l.b16 %v791
        %v856 = vunpack.c.l.b16 %v792
        %v857 = vunpack.c.l.b16 %v793
        %v858 = vunpack.c.l.b16 %v794
        %v859 = vunpack.c.l.b16 %v795
        %v860 = vpack.c.b16 %v829, %v828
        %v861 = vpack.c.b16 %v831, %v830
        %v862 = vpack.c.b16 %v833, %v832
        %v863 = vpack.c.b16 %v835, %v834
        %v864 = vpack.c.b16 %v837, %v836
        %v865 = vpack.c.b16 %v839, %v838
        %v866 = vpack.c.b16 %v841, %v840
        %v867 = vpack.c.b16 %v843, %v842
        %v868 = vpack.c.b16 %v845, %v844
        %v869 = vpack.c.b16 %v847, %v846
        %v870 = vpack.c.b16 %v849, %v848
        %v871 = vpack.c.b16 %v851, %v850
        %v872 = vpack.c.b16 %v853, %v852
        %v873 = vpack.c.b16 %v855, %v854
        %v874 = vpack.c.b16 %v857, %v856
        %v875 = vpack.c.b16 %v859, %v858
        %892 = vmatprep.subr.bf16.mxu0 0
        %893 = vmatpush1.bf16.msra.mxu0 %v867
        %894 = vmatprep.subr.bf16.mxu0 0
        %895 = vmatpush1.bf16.msra.mxu0 %v866
        %896 = vmatprep.subr.bf16.mxu0 0
        %897 = vmatpush1.bf16.msra.mxu0 %v865
        %898 = vmatprep.subr.bf16.mxu0 0
        %899 = vmatpush1.bf16.msra.mxu0 %v864
        %900 = vmatprep.subr.bf16.mxu0 0
        %901 = vmatpush1.bf16.msra.mxu0 %v863
        %902 = vmatprep.subr.bf16.mxu0 0
        %903 = vmatpush1.bf16.msra.mxu0 %v862
        %904 = vmatprep.subr.bf16.mxu0 0
        %905 = vmatpush1.bf16.msra.mxu0 %v861
        %906 = vmatprep.subr.bf16.mxu0 0
        %907 = vmatpush1.bf16.msra.mxu0 %v860
        %908 = vmatprep.subr.bf16.mxu0 0
        %909 = vmatpush2.bf16.msra.mxu0 %v875
        %910 = vmatprep.subr.bf16.mxu0 0
        %911 = vmatpush2.bf16.msra.mxu0 %v874
        %912 = vmatprep.subr.bf16.mxu0 0
        %913 = vmatpush2.bf16.msra.mxu0 %v873
        %914 = vmatprep.subr.bf16.mxu0 0
        %915 = vmatpush2.bf16.msra.mxu0 %v872
        %916 = vmatprep.subr.bf16.mxu0 0
        %917 = vmatpush2.bf16.msra.mxu0 %v871
        %918 = vmatprep.subr.bf16.mxu0 0
        %919 = vmatpush2.bf16.msra.mxu0 %v870
        %920 = vmatprep.subr.bf16.mxu0 0
        %921 = vmatpush2.bf16.msra.mxu0 %v869
        %922 = vmatprep.subr.bf16.mxu0 0
        %923 = vmatpush2.bf16.msra.mxu0 %v868
        %924 = vmatprep.mubr.bf16.mxu0 %v761
        %925 = vmatmul.mubr.bf16.gmra.mxu0 %v760
        %v926 = vpop.f32.mrf.mxu0
        %v927 = vadd.f32 0.0, %v926
        %v928 = vpop.f32.mrf.mxu0
        %v929 = vpop.f32.mrf.mxu0
        %v930 = vadd.f32 0.0, %v929
        %v931 = vpop.f32.mrf.mxu0
        %932 = vmatprep.mubr.bf16.mxu0 %v763
        %933 = vmatmul.mubr.bf16.gmra.mxu0 %v762
        %v934 = vpop.f32.mrf.mxu0
        %v935 = vadd.f32 0.0, %v934
        %v936 = vpop.f32.mrf.mxu0
        %v937 = vpop.f32.mrf.mxu0
        %v938 = vadd.f32 0.0, %v937
        %v939 = vpop.f32.mrf.mxu0
        %940 = vdwg.mxu0
        %v941 = vmax.f32 %v927, 1e-10
        %v942 = vmax.f32 %v930, 1e-10
        %v943 = vmax.f32 %v935, 1e-10
        %v944 = vmax.f32 %v938, 1e-10
        %v945 = vlog2.pop %v941
        %v946 = vmul.f32 %v945, 0.6931472
        %v947 = vlog2.pop %v942
        %v948 = vmul.f32 %v947, 0.6931472
        %v949 = vlog2.pop %v943
        %v950 = vmul.f32 %v949, 0.6931472
        %v951 = vlog2.pop %v944
        %v952 = vmul.f32 %v951, 0.6931472
        %v953 = vmul.f32 %v946, 0.4342945
        %v954 = vmul.f32 %v948, 0.4342945
        %v955 = vmul.f32 %v950, 0.4342945
        %v956 = vmul.f32 %v952, 0.4342945
        %v957 = vmul.f32 %v953, 10.0
        %v958 = vmul.f32 %v954, 10.0
        %v959 = vmul.f32 %v955, 10.0
        %v960 = vmul.f32 %v956, 10.0
        %961 = vst [vmem:[%s218] sm:$0xff] %v957
        %962 = vst [vmem:[%s218 + $0x8] sm:$0xff] %v958
        %963 = vst [vmem:[%s218 + $0x10] sm:$0xff] %v959
        %964 = vst [vmem:[%s218 + $0x18] sm:$0xff] %v960
        %s965 = sand.u32 %s97, 1
        %s966 = scalar_lea.sflag [#allocation4], %s965
        %s967 = sand.u32 %s97, 1
        %s968 = smul.addr %s967, 32
        %s969 = scalar_lea.vmem [#allocation8], %s968
        // Predicated region
        $region45: #{tpu_custom_call.1} parent=31 // pred_check
          %p970 = pneg %p107
        $region46: #{tpu_custom_call.1} parent=31 // pred_check_branch
          %972 = sbr.rel (%p970) target = $region48
        $region47: #{tpu_custom_call.1} parent=31 // pred_region
          %s973 = smul.u32 4, %s21
          %s975 = ssub.s32 512, 512
          %976 = vsyncadd %s966, %s975
          %s977 = smul.addr %s973, 128
          %s978 = scalar_lea.hbm %s3, %s977
          %s979 = sshll.u32 %s969, 4
          %s980 = int_to_ptr.vmem [resolvable:$true] %s979
          %985 = dma.vmem_to_hbm [thread:$0]  %s980, 512, %s978, %s966, 128, 128, 8
        $region48: #{tpu_custom_call.1} parent=31 // pred_fallthru
          _
      $region32: #{tpu_custom_call.1} parent=5 // pred_fallthru
        _
      %p986 = scmp.le.s32.totalorder 2, %s16
      // Predicated region
      $region49: #{tpu_custom_call.1} parent=5 // pred_check
        %p987 = pneg %p986
      $region50: #{tpu_custom_call.1} parent=5 // pred_check_branch
        %989 = sbr.rel (%p987) target = $region52
      $region51: #{tpu_custom_call.1} parent=5 // pred_region
        %s990 = ssub.s32 %s16, 2
        // Predicated region
        $region53: #{tpu_custom_call.1} parent=51 // pred_check
          %p991 = pneg %p113
        $region54: #{tpu_custom_call.1} parent=51 // pred_check_branch
          %993 = sbr.rel (%p991) target = $region56
        $region55: #{tpu_custom_call.1} parent=51 // pred_region
          %s994 = sand.u32 %s98, 1
          %s995 = scalar_lea.sflag [#allocation4], %s994
          %s996 = sand.u32 %s98, 1
          %s997 = smul.addr %s996, 32
          %s998 = scalar_lea.vmem [#allocation8], %s997
          %999 = dma.done %s995, 512
        $region56: #{tpu_custom_call.1} parent=51 // pred_fallthru
          _
      $region52: #{tpu_custom_call.1} parent=5 // pred_fallthru
        _
    $region6: #{tpu_custom_call.1} parent=1 // loop_footer
      %s20 = sadd.s32 1, %s16
    $region7: #{tpu_custom_call.1} parent=1 // loop_footer_branch
      %15 = sbr.rel target = $region3
    $region8: #{tpu_custom_call.1} parent=1 // loop_exit
      _
    %1000 = vsyncpa [#allocation3], 1
    %s1001 = scalar_lea.sflag [#allocation3], 1
    %1002 = vsyncpa %s1001, 1
    %1003 = vsyncpa [#allocation6], 1
    %1004 = vsyncpa [#allocation4], 1
    %s1005 = scalar_lea.sflag [#allocation4], 1
    %1006 = vsyncpa %s1005, 1

</llo_original>
